<compile_context>
chip_gen: v5e
topology: v5e:2x2
jax: 0.10.0
libtpu: 0.0.40
codegen_flags: <defaults>
</compile_context>

<pallas_src>
import functools

import jax
import jax.numpy as jnp
from jax.experimental import pallas as pl
from jax.experimental.pallas import tpu as pltpu


def _round_up(x, m):
    return (x + m - 1) // m * m


def _ppo_kernel(x_ref, w1_ref, b1_ref, w2_ref, b2_ref, w3_ref, b3_ref, v3_ref,
                out_ref, *, hidden_dim, action_dim):
    # ---- fused layer 1 (shared input x): x @ [pw1 | vw1] -> (TB, 2H) --------
    # The f32->bf16 cast happens here, not as a separate XLA pass in HBM.
    x = x_ref[...].astype(jnp.bfloat16)
    hg = jnp.dot(x, w1_ref[...], preferred_element_type=jnp.float32) + b1_ref[...]
    hg = jnp.maximum(hg, 0.0).astype(jnp.bfloat16)
    h = hg[:, :hidden_dim]                      # policy branch (128-aligned slice)
    g = hg[:, hidden_dim:]                      # value branch

    # ---- layer 2 (per-head; different inputs -> two K=H MXU dots) -----------
    h2 = jnp.dot(h, w2_ref[0], preferred_element_type=jnp.float32) + b2_ref[0]
    h2 = jnp.maximum(h2, 0.0).astype(jnp.bfloat16)
    g2 = jnp.dot(g, w2_ref[1], preferred_element_type=jnp.float32) + b2_ref[1]
    g2 = jnp.maximum(g2, 0.0)                   # stays f32: feeds VPU value reduce

    # ---- policy layer 3 on the MXU into a lane-dense 128-wide slab ----------
    pre = jnp.dot(h2, w3_ref[...], preferred_element_type=jnp.float32) + b3_ref[...]
    lane = jax.lax.broadcasted_iota(jnp.int32, pre.shape, 1)
    logits = jnp.where(lane < action_dim, pre, jnp.float32(-1e30))
    m = jnp.max(logits, axis=-1, keepdims=True)
    e = jnp.exp(logits - m)                     # padding lanes -> exactly 0
    # Exact reciprocal: probs feed PPO log-ratios downstream.
    probs = e / jnp.sum(e, axis=-1, keepdims=True)

    # ---- value layer 3: 1-column weight -> skip the MXU entirely ------------
    # VPU multiply + XLU lane reduce land in slots with slack while the MXU is
    # the binder; computed in f32 for value precision.
    value = jnp.sum(g2 * v3_ref[...], axis=-1, keepdims=True)        # (TB, 1)

    # Single unmasked 128-lane store: probs in [0, A); value (+ its bias held
    # in b3's column A) at lane A.
    out_ref[...] = jnp.where(lane == action_dim, value + b3_ref[...], probs)


def init_params(key, state_dim, action_dim, hidden_dim=256, dtype=jnp.float32):
    """Deterministic parameter init (PyTorch weight convention: (out, in))."""
    ks = jax.random.split(key, 12)

    def lin(kw, kb, out_f, in_f):
        bound = 1.0 / jnp.sqrt(jnp.asarray(in_f, dtype))
        w = jax.random.uniform(kw, (out_f, in_f), dtype, -bound, bound)
        b = jax.random.uniform(kb, (out_f,), dtype, -bound, bound)
        return w, b

    params = {}
    params["p1_w"], params["p1_b"] = lin(ks[0], ks[1], hidden_dim, state_dim)
    params["p2_w"], params["p2_b"] = lin(ks[2], ks[3], hidden_dim, hidden_dim)
    params["p3_w"], params["p3_b"] = lin(ks[4], ks[5], action_dim, hidden_dim)
    params["v1_w"], params["v1_b"] = lin(ks[6], ks[7], hidden_dim, state_dim)
    params["v2_w"], params["v2_b"] = lin(ks[8], ks[9], hidden_dim, hidden_dim)
    params["v3_w"], params["v3_b"] = lin(ks[10], ks[11], 1, hidden_dim)
    return params


def pack_params(params):
    """One-time repack (outside the hot path): pre-transpose to (in, out),
    fuse the two heads' layer-1, pad policy layer-3 to a 128-multiple
    lane-dense slab, keep the value layer-3 as a tiny (1, H) f32 row,
    cast matmul weights to bf16."""
    hidden = params["p2_w"].shape[0]
    action = params["p3_w"].shape[0]
    assert hidden % 128 == 0, "hidden_dim must be a multiple of 128"
    out_w = _round_up(action + 1, 128)

    w1 = jnp.concatenate([params["p1_w"].T, params["v1_w"].T], axis=1)      # (S, 2H)
    b1 = jnp.concatenate([params["p1_b"], params["v1_b"]]).reshape(1, 2 * hidden)

    w2 = jnp.stack([params["p2_w"].T, params["v2_w"].T])                    # (2, H, H)
    b2 = jnp.stack([params["p2_b"].reshape(1, hidden),
                    params["v2_b"].reshape(1, hidden)])                     # (2, 1, H)

    # Policy layer-3 weights in columns [0, A); value bias stored at column A.
    w3 = jnp.zeros((hidden, out_w), jnp.float32).at[:, :action].set(params["p3_w"].T)
    b3 = (jnp.zeros((1, out_w), jnp.float32)
          .at[0, :action].set(params["p3_b"])
          .at[0, action].set(params["v3_b"][0]))
    v3 = params["v3_w"].reshape(1, hidden).astype(jnp.float32)              # (1, H)

    return {
        "w1": w1.astype(jnp.bfloat16), "b1": b1.astype(jnp.float32),
        "w2": w2.astype(jnp.bfloat16), "b2": b2.astype(jnp.float32),
        "w3": w3.astype(jnp.bfloat16), "b3": b3.astype(jnp.float32),
        "v3": v3,
    }


@functools.partial(jax.jit, static_argnames=("action_dim",))
def rubiks_cube_ppo_forward(state, packed, *, action_dim):
    # Flatten any extra dims, like the PyTorch module.
    if state.ndim > 2:
        state = state.reshape(state.shape[0], -1)
    batch, state_dim = state.shape
    hidden = packed["w2"].shape[1]
    out_w = packed["w3"].shape[1]

    # Batch tile: cap 1024 (per-step overhead amortization), but keep >= 2
    # grid steps for large batches so ("parallel",) shards across v7x's two
    # TensorCores.  No full-batch pad: the ragged last block is masked by
    # Pallas (rows are independent), tiny batches just use one full block.
    tb = min(1024, _round_up(pl.cdiv(batch, 2), 8))
    if tb >= batch:
        tb = batch
    grid = (pl.cdiv(batch, tb),)

    kernel = functools.partial(_ppo_kernel, hidden_dim=hidden, action_dim=action_dim)

    const2 = lambda i: (0, 0)
    const3 = lambda i: (0, 0, 0)
    in_specs = [
        pl.BlockSpec((tb, state_dim), lambda i: (i, 0)),   # state tiles stream
        pl.BlockSpec(packed["w1"].shape, const2),          # weights stay resident
        pl.BlockSpec(packed["b1"].shape, const2),
        pl.BlockSpec(packed["w2"].shape, const3),
        pl.BlockSpec(packed["b2"].shape, const3),
        pl.BlockSpec(packed["w3"].shape, const2),
        pl.BlockSpec(packed["b3"].shape, const2),
        pl.BlockSpec(packed["v3"].shape, const2),
    ]
    out_spec = pl.BlockSpec((tb, out_w), lambda i: (i, 0))

    # Advisory cost estimate so XLA schedules surrounding PPO ops sensibly.
    flops = 2 * batch * (state_dim * 2 * hidden + 2 * hidden * hidden
                         + hidden * out_w + hidden)
    transcendentals = batch * out_w
    bytes_accessed = (int(state.size) * state.dtype.itemsize
                      + batch * out_w * 4
                      + sum(int(v.size) * v.dtype.itemsize for v in packed.values()))

    slab = pl.pallas_call(
        kernel,
        out_shape=jax.ShapeDtypeStruct((batch, out_w), jnp.float32),
        grid=grid,
        in_specs=in_specs,
        out_specs=out_spec,
        compiler_params=pltpu.CompilerParams(dimension_semantics=("parallel",)),
        cost_estimate=pl.CostEstimate(flops=flops,
                                      transcendentals=transcendentals,
                                      bytes_accessed=bytes_accessed),
    )(state, packed["w1"], packed["b1"], packed["w2"], packed["b2"],
      packed["w3"], packed["b3"], packed["v3"])

    probs = slab[:, :action_dim]
    value = slab[:, action_dim:action_dim + 1]
    return probs, value


def _reference_forward(state, params):
    if state.ndim > 2:
        state = state.reshape(state.shape[0], -1)
    x = state.astype(jnp.float32)

    def lin(x, w, b):
        return x @ w.T + b

    h = jax.nn.relu(lin(x, params["p1_w"], params["p1_b"]))
    h = jax.nn.relu(lin(h, params["p2_w"], params["p2_b"]))
    probs = jax.nn.softmax(lin(h, params["p3_w"], params["p3_b"]), axis=-1)

    g = jax.nn.relu(lin(x, params["v1_w"], params["v1_b"]))
    g = jax.nn.relu(lin(g, params["v2_w"], params["v2_b"]))
    value = lin(g, params["v3_w"], params["v3_b"])
    return probs, value


if __name__ == "__main__":
    # Small shapes consistent with the module: batch=4, state (batch, 6, 9)
    # -> state_dim=54 (6 faces x 9 stickers), action_dim=12 face turns,
    # hidden=256 (module default; keeps the 256-deep v6e/v7x MXU full).
    batch, s0, s1 = 4, 6, 9
    state_dim = s0 * s1
    action_dim = 12
    hidden_dim = 256

    key = jax.random.PRNGKey(0)
    k_state, k_params = jax.random.split(key)
    state = jax.random.normal(k_state, (batch, s0, s1), dtype=jnp.float32)
    params = init_params(k_params, state_dim, action_dim, hidden_dim)
    packed = pack_params(params)   # one-time repack (outside the hot path)

    probs, value = rubiks_cube_ppo_forward(state, packed, action_dim=action_dim)
    jax.block_until_ready((probs, value))

    ref_probs, ref_value = _reference_forward(state, params)
    assert probs.shape == (batch, action_dim)
    assert value.shape == (batch, 1)
    # Tolerances account for bf16 MXU inputs (layers 1-2); layer-3 is f32.
    assert jnp.allclose(probs, ref_probs, atol=3e-2, rtol=3e-2)
    assert jnp.allclose(value, ref_value, atol=3e-2, rtol=3e-2)
    assert jnp.allclose(jnp.sum(probs, axis=-1), 1.0, atol=1e-3)

    print("KERNEL_OK")
</pallas_src>

<mosaic_0001>
module attributes {stable_mosaic.version = 11 : i64} {
  func.func @_ppo_kernel(%arg0: i32, %arg1: memref<4x54xf32, #tpu.memory_space<vmem>>, %arg2: memref<54x512xbf16, #tpu.memory_space<vmem>>, %arg3: memref<1x512xf32, #tpu.memory_space<vmem>>, %arg4: memref<2x256x256xbf16, #tpu.memory_space<vmem>>, %arg5: memref<2x1x256xf32, #tpu.memory_space<vmem>>, %arg6: memref<256x128xbf16, #tpu.memory_space<vmem>>, %arg7: memref<1x128xf32, #tpu.memory_space<vmem>>, %arg8: memref<1x256xf32, #tpu.memory_space<vmem>>, %arg9: memref<4x128xf32, #tpu.memory_space<vmem>>) attributes {dimension_semantics = [#tpu.dimension_semantics<parallel>], iteration_bounds = array<i64: 1>, scalar_prefetch = 0 : i64, scratch_operands = 0 : i64, tpu.core_type = #tpu.core_type<tc>, window_params = [{transform_indices = @transform_0, window_bounds = array<i64: 4, 54>}, {pipeline_mode = #tpu.pipeline_mode<synchronous>, transform_indices = @transform_1, window_bounds = array<i64: 54, 512>}, {pipeline_mode = #tpu.pipeline_mode<synchronous>, transform_indices = @transform_2, window_bounds = array<i64: 1, 512>}, {pipeline_mode = #tpu.pipeline_mode<synchronous>, transform_indices = @transform_3, window_bounds = array<i64: 2, 256, 256>}, {pipeline_mode = #tpu.pipeline_mode<synchronous>, transform_indices = @transform_4, window_bounds = array<i64: 2, 1, 256>}, {pipeline_mode = #tpu.pipeline_mode<synchronous>, transform_indices = @transform_5, window_bounds = array<i64: 256, 128>}, {pipeline_mode = #tpu.pipeline_mode<synchronous>, transform_indices = @transform_6, window_bounds = array<i64: 1, 128>}, {pipeline_mode = #tpu.pipeline_mode<synchronous>, transform_indices = @transform_7, window_bounds = array<i64: 1, 256>}, {transform_indices = @transform_8, window_bounds = array<i64: 4, 128>}]} {
    %c0 = arith.constant 0 : index
    %c0_0 = arith.constant 0 : index
    %0 = vector.load %arg1[%c0, %c0_0] : memref<4x54xf32, #tpu.memory_space<vmem>>, vector<4x54xf32>
    %1 = arith.truncf %0 : vector<4x54xf32> to vector<4x54xbf16>
    %c0_1 = arith.constant 0 : index
    %c0_2 = arith.constant 0 : index
    %2 = vector.load %arg2[%c0_1, %c0_2] : memref<54x512xbf16, #tpu.memory_space<vmem>>, vector<54x512xbf16>
    %cst = arith.constant dense<0.000000e+00> : vector<4x512xf32>
    %3 = tpu.matmul %1, %2, %cst {dimension_numbers = #tpu.dot_dimension_numbers<[1], [0], [0], [1], [0, 0, 1, 1], [], []>} : vector<4x54xbf16>, vector<54x512xbf16>, vector<4x512xf32> -> vector<4x512xf32>
    %c0_3 = arith.constant 0 : index
    %c0_4 = arith.constant 0 : index
    %4 = vector.load %arg3[%c0_3, %c0_4] : memref<1x512xf32, #tpu.memory_space<vmem>>, vector<1x512xf32>
    %5 = vector.broadcast %4 : vector<1x512xf32> to vector<4x512xf32>
    %6 = arith.addf %3, %5 : vector<4x512xf32>
    %cst_5 = arith.constant 0.000000e+00 : f32
    %7 = vector.broadcast %cst_5 : f32 to vector<4x512xf32>
    %8 = arith.maximumf %6, %7 : vector<4x512xf32>
    %9 = arith.truncf %8 : vector<4x512xf32> to vector<4x512xbf16>
    %10 = vector.extract_strided_slice %9 {offsets = [0, 0], sizes = [4, 256], strides = [1, 1]} : vector<4x512xbf16> to vector<4x256xbf16>
    %11 = vector.extract_strided_slice %9 {offsets = [0, 256], sizes = [4, 256], strides = [1, 1]} : vector<4x512xbf16> to vector<4x256xbf16>
    %c0_6 = arith.constant 0 : index
    %c0_7 = arith.constant 0 : index
    %c0_8 = arith.constant 0 : index
    %12 = vector.load %arg4[%c0_6, %c0_7, %c0_8] : memref<2x256x256xbf16, #tpu.memory_space<vmem>>, vector<1x256x256xbf16>
    %13 = vector.shape_cast %12 : vector<1x256x256xbf16> to vector<256x256xbf16>
    %cst_9 = arith.constant dense<0.000000e+00> : vector<4x256xf32>
    %14 = tpu.matmul %10, %13, %cst_9 {dimension_numbers = #tpu.dot_dimension_numbers<[1], [0], [0], [1], [0, 0, 1, 1], [], []>} : vector<4x256xbf16>, vector<256x256xbf16>, vector<4x256xf32> -> vector<4x256xf32>
    %c0_10 = arith.constant 0 : index
    %c0_11 = arith.constant 0 : index
    %c0_12 = arith.constant 0 : index
    %15 = vector.load %arg5[%c0_10, %c0_11, %c0_12] : memref<2x1x256xf32, #tpu.memory_space<vmem>>, vector<1x1x256xf32>
    %16 = vector.shape_cast %15 : vector<1x1x256xf32> to vector<1x256xf32>
    %17 = vector.broadcast %16 : vector<1x256xf32> to vector<4x256xf32>
    %18 = arith.addf %14, %17 : vector<4x256xf32>
    %cst_13 = arith.constant 0.000000e+00 : f32
    %19 = vector.broadcast %cst_13 : f32 to vector<4x256xf32>
    %20 = arith.maximumf %18, %19 : vector<4x256xf32>
    %21 = arith.truncf %20 : vector<4x256xf32> to vector<4x256xbf16>
    %c1 = arith.constant 1 : index
    %c0_14 = arith.constant 0 : index
    %c0_15 = arith.constant 0 : index
    %22 = vector.load %arg4[%c1, %c0_14, %c0_15] : memref<2x256x256xbf16, #tpu.memory_space<vmem>>, vector<1x256x256xbf16>
    %23 = vector.shape_cast %22 : vector<1x256x256xbf16> to vector<256x256xbf16>
    %cst_16 = arith.constant dense<0.000000e+00> : vector<4x256xf32>
    %24 = tpu.matmul %11, %23, %cst_16 {dimension_numbers = #tpu.dot_dimension_numbers<[1], [0], [0], [1], [0, 0, 1, 1], [], []>} : vector<4x256xbf16>, vector<256x256xbf16>, vector<4x256xf32> -> vector<4x256xf32>
    %c1_17 = arith.constant 1 : index
    %c0_18 = arith.constant 0 : index
    %c0_19 = arith.constant 0 : index
    %25 = vector.load %arg5[%c1_17, %c0_18, %c0_19] : memref<2x1x256xf32, #tpu.memory_space<vmem>>, vector<1x1x256xf32>
    %26 = vector.shape_cast %25 : vector<1x1x256xf32> to vector<1x256xf32>
    %27 = vector.broadcast %26 : vector<1x256xf32> to vector<4x256xf32>
    %28 = arith.addf %24, %27 : vector<4x256xf32>
    %cst_20 = arith.constant 0.000000e+00 : f32
    %29 = vector.broadcast %cst_20 : f32 to vector<4x256xf32>
    %30 = arith.maximumf %28, %29 : vector<4x256xf32>
    %c0_21 = arith.constant 0 : index
    %c0_22 = arith.constant 0 : index
    %31 = vector.load %arg6[%c0_21, %c0_22] : memref<256x128xbf16, #tpu.memory_space<vmem>>, vector<256x128xbf16>
    %cst_23 = arith.constant dense<0.000000e+00> : vector<4x128xf32>
    %32 = tpu.matmul %21, %31, %cst_23 {dimension_numbers = #tpu.dot_dimension_numbers<[1], [0], [0], [1], [0, 0, 1, 1], [], []>} : vector<4x256xbf16>, vector<256x128xbf16>, vector<4x128xf32> -> vector<4x128xf32>
    %c0_24 = arith.constant 0 : index
    %c0_25 = arith.constant 0 : index
    %33 = vector.load %arg7[%c0_24, %c0_25] : memref<1x128xf32, #tpu.memory_space<vmem>>, vector<1x128xf32>
    %34 = vector.broadcast %33 : vector<1x128xf32> to vector<4x128xf32>
    %35 = arith.addf %32, %34 : vector<4x128xf32>
    %36 = tpu.iota {dimensions = array<i32: 1>} : vector<4x128xi32>
    %c12_i32 = arith.constant 12 : i32
    %37 = vector.broadcast %c12_i32 : i32 to vector<4x128xi32>
    %38 = arith.cmpi slt, %36, %37 : vector<4x128xi32>
    %cst_26 = arith.constant -1.000000e+30 : f32
    %39 = vector.broadcast %cst_26 : f32 to vector<4x128xf32>
    %40 = arith.select %38, %35, %39 : vector<4x128xi1>, vector<4x128xf32>
    %cst_27 = arith.constant dense<0xFF800000> : vector<4xf32>
    %41 = vector.multi_reduction <maximumf>, %40, %cst_27 [1] : vector<4x128xf32> to vector<4xf32>
    %42 = vector.shape_cast %41 : vector<4xf32> to vector<4x1xf32>
    %43 = vector.broadcast %42 : vector<4x1xf32> to vector<4x128xf32>
    %44 = arith.subf %40, %43 : vector<4x128xf32>
    %45 = math.exp %44 : vector<4x128xf32>
    %cst_28 = arith.constant dense<0.000000e+00> : vector<4xf32>
    %46 = vector.multi_reduction <add>, %45, %cst_28 [1] : vector<4x128xf32> to vector<4xf32>
    %47 = vector.shape_cast %46 : vector<4xf32> to vector<4x1xf32>
    %48 = vector.broadcast %47 : vector<4x1xf32> to vector<4x128xf32>
    %49 = arith.divf %45, %48 : vector<4x128xf32>
    %c0_29 = arith.constant 0 : index
    %c0_30 = arith.constant 0 : index
    %50 = vector.load %arg8[%c0_29, %c0_30] : memref<1x256xf32, #tpu.memory_space<vmem>>, vector<1x256xf32>
    %51 = vector.broadcast %50 : vector<1x256xf32> to vector<4x256xf32>
    %52 = arith.mulf %30, %51 : vector<4x256xf32>
    %cst_31 = arith.constant dense<0.000000e+00> : vector<4xf32>
    %53 = vector.multi_reduction <add>, %52, %cst_31 [1] : vector<4x256xf32> to vector<4xf32>
    %54 = vector.shape_cast %53 : vector<4xf32> to vector<4x1xf32>
    %c12_i32_32 = arith.constant 12 : i32
    %55 = vector.broadcast %c12_i32_32 : i32 to vector<4x128xi32>
    %56 = arith.cmpi eq, %36, %55 : vector<4x128xi32>
    %c0_33 = arith.constant 0 : index
    %c0_34 = arith.constant 0 : index
    %57 = vector.load %arg7[%c0_33, %c0_34] : memref<1x128xf32, #tpu.memory_space<vmem>>, vector<1x128xf32>
    %58 = vector.broadcast %54 : vector<4x1xf32> to vector<4x128xf32>
    %59 = vector.broadcast %57 : vector<1x128xf32> to vector<4x128xf32>
    %60 = arith.addf %58, %59 : vector<4x128xf32>
    %61 = arith.select %56, %60, %49 : vector<4x128xi1>, vector<4x128xf32>
    %c0_35 = arith.constant 0 : index
    %c0_36 = arith.constant 0 : index
    %62 = vector.load %arg9[%c0_35, %c0_36] : memref<4x128xf32, #tpu.memory_space<vmem>>, vector<4x128xf32>
    tpu.vector_store %arg9[%c0_35, %c0_36], %61 {strides = array<i32>} : memref<4x128xf32, #tpu.memory_space<vmem>>, vector<4x128xf32>,
    return
  }
  func.func @transform_0(%arg0: i32) -> (i32, i32) {
    %c0_i32 = arith.constant 0 : i32
    %c0_i32_0 = arith.constant 0 : i32
    return %arg0, %c0_i32 : i32, i32
  }
  func.func @transform_1(%arg0: i32) -> (i32, i32) {
    %c0_i32 = arith.constant 0 : i32
    %c0_i32_0 = arith.constant 0 : i32
    %c0_i32_1 = arith.constant 0 : i32
    return %c0_i32, %c0_i32_0 : i32, i32
  }
  func.func @transform_2(%arg0: i32) -> (i32, i32) {
    %c0_i32 = arith.constant 0 : i32
    %c0_i32_0 = arith.constant 0 : i32
    %c0_i32_1 = arith.constant 0 : i32
    return %c0_i32, %c0_i32_0 : i32, i32
  }
  func.func @transform_3(%arg0: i32) -> (i32, i32, i32) {
    %c0_i32 = arith.constant 0 : i32
    %c0_i32_0 = arith.constant 0 : i32
    %c0_i32_1 = arith.constant 0 : i32
    %c0_i32_2 = arith.constant 0 : i32
    return %c0_i32, %c0_i32_0, %c0_i32_1 : i32, i32, i32
  }
  func.func @transform_4(%arg0: i32) -> (i32, i32, i32) {
    %c0_i32 = arith.constant 0 : i32
    %c0_i32_0 = arith.constant 0 : i32
    %c0_i32_1 = arith.constant 0 : i32
    %c0_i32_2 = arith.constant 0 : i32
    return %c0_i32, %c0_i32_0, %c0_i32_1 : i32, i32, i32
  }
  func.func @transform_5(%arg0: i32) -> (i32, i32) {
    %c0_i32 = arith.constant 0 : i32
    %c0_i32_0 = arith.constant 0 : i32
    %c0_i32_1 = arith.constant 0 : i32
    return %c0_i32, %c0_i32_0 : i32, i32
  }
  func.func @transform_6(%arg0: i32) -> (i32, i32) {
    %c0_i32 = arith.constant 0 : i32
    %c0_i32_0 = arith.constant 0 : i32
    %c0_i32_1 = arith.constant 0 : i32
    return %c0_i32, %c0_i32_0 : i32, i32
  }
  func.func @transform_7(%arg0: i32) -> (i32, i32) {
    %c0_i32 = arith.constant 0 : i32
    %c0_i32_0 = arith.constant 0 : i32
    %c0_i32_1 = arith.constant 0 : i32
    return %c0_i32, %c0_i32_0 : i32, i32
  }
  func.func @transform_8(%arg0: i32) -> (i32, i32) {
    %c0_i32 = arith.constant 0 : i32
    %c0_i32_0 = arith.constant 0 : i32
    return %arg0, %c0_i32 : i32, i32
  }
}

</mosaic_0001>

<llo_original>
// kernel: rubiks_cube_ppo_forward.1
$region0: #{rubiks_cube_ppo_forward.1}
  #allocation0 [shape = 'u32[]', space=smem, size = 0x4, offset = 0x4, fixed_abs, tag = 'smem constant byte address 0x4 - core index']
  #allocation1 [shape = 'u32[72,128]{1,0:T(1,128)}', space=vmem, size = 0x9000, scoped, tag = 'internal scratch']
  %s0 = inlined_call_operand.vmem [shape: f32[4,54], index: 0, kind: input, shape index: {}]
  %s1 = inlined_call_operand.hbm [shape: bf16[54,512], index: 1, kind: input, shape index: {}]
  %s2 = inlined_call_operand.vmem [shape: f32[1,512], index: 2, kind: input, shape index: {}]
  %s3 = inlined_call_operand.hbm [shape: bf16[2,256,256], index: 3, kind: input, shape index: {}]
  %s4 = inlined_call_operand.vmem [shape: f32[2,1,256], index: 4, kind: input, shape index: {}]
  %s5 = inlined_call_operand.hbm [shape: bf16[256,128], index: 5, kind: input, shape index: {}]
  %s6 = inlined_call_operand.vmem [shape: f32[1,128], index: 6, kind: input, shape index: {}]
  %s7 = inlined_call_operand.vmem [shape: f32[1,256], index: 7, kind: input, shape index: {}]
  %s8 = inlined_call_operand.vmem [shape: f32[4,128], index: 8, kind: output, shape index: {}]
  %s9 = sld [smem:[#allocation0]]
  $region54: #{rubiks_cube_ppo_forward.1} parent=0
    _
  %s11 = ssub.s32 1, %s9
  %s12 = scalar_select 0, %s11, %s9
  $region1: #{rubiks_cube_ppo_forward.1} parent=0
    #allocation2 [shape = 'u8[57344]{0}', space=vmem, size = 0xe000, scoped, tag = 'input window, operand 1, single buffered']
    #allocation3 [shape = 's32[1]{0}', space=sflag, size = 0x4, scoped, tag = 'scoped memory for rubiks_cube_ppo_forward.1']
    #allocation4 [shape = 'u8[262144]{0}', space=vmem, size = 0x40000, scoped, tag = 'input window, operand 3, single buffered']
    #allocation5 [shape = 's32[1]{0}', space=sflag, size = 0x4, scoped, tag = 'scoped memory for rubiks_cube_ppo_forward.1']
    #allocation6 [shape = 'u8[65536]{0}', space=vmem, size = 0x10000, scoped, tag = 'input window, operand 5, single buffered']
    %13 = vsyncpa [#allocation3], 0
    %14 = vsyncpa [#allocation5], 0
    // Predicated region
    $region2: #{rubiks_cube_ppo_forward.1} parent=1 // pred_check
      _
    $region3: #{rubiks_cube_ppo_forward.1} parent=1 // pred_check_branch
      %16 = sbr.rel (0) target = $region5
    $region4: #{rubiks_cube_ppo_forward.1} parent=1 // pred_region
      _
    $region5: #{rubiks_cube_ppo_forward.1} parent=1 // pred_fallthru
      _
    // Predicated region
    $region6: #{rubiks_cube_ppo_forward.1} parent=1 // pred_check
      _
    $region7: #{rubiks_cube_ppo_forward.1} parent=1 // pred_check_branch
      %18 = sbr.rel (0) target = $region9
    $region8: #{rubiks_cube_ppo_forward.1} parent=1 // pred_region
      %20 = vsyncadd [#allocation3], 0
      %s21 = sshll.u32 %s1, 4
      %s22 = int_to_ptr.hbm [resolvable:$true] %s21
      %s23 = sshll.u32 [#allocation2], 4
      %s24 = int_to_ptr.vmem [resolvable:$true] %s23
      %29 = dma.hbm_to_vmem [thread:$0]  %s22, 1792, %s24, [#allocation3], 256, 256, 16
    $region9: #{rubiks_cube_ppo_forward.1} parent=1 // pred_fallthru
      _
    // Predicated region
    $region10: #{rubiks_cube_ppo_forward.1} parent=1 // pred_check
      _
    $region11: #{rubiks_cube_ppo_forward.1} parent=1 // pred_check_branch
      %31 = sbr.rel (0) target = $region13
    $region12: #{rubiks_cube_ppo_forward.1} parent=1 // pred_region
      _
    $region13: #{rubiks_cube_ppo_forward.1} parent=1 // pred_fallthru
      _
    // Predicated region
    $region14: #{rubiks_cube_ppo_forward.1} parent=1 // pred_check
      _
    $region15: #{rubiks_cube_ppo_forward.1} parent=1 // pred_check_branch
      %33 = sbr.rel (0) target = $region17
    $region16: #{rubiks_cube_ppo_forward.1} parent=1 // pred_region
      %35 = vsyncadd [#allocation5], 0
      %s36 = sshll.u32 %s3, 4
      %s37 = int_to_ptr.hbm [resolvable:$true] %s36
      %s38 = sshll.u32 [#allocation4], 4
      %s39 = int_to_ptr.vmem [resolvable:$true] %s38
      %44 = dma.hbm_to_vmem [thread:$0]  %s37, 8192, %s39, [#allocation5], 128, 128, 8
    $region17: #{rubiks_cube_ppo_forward.1} parent=1 // pred_fallthru
      _
    // Predicated region
    $region18: #{rubiks_cube_ppo_forward.1} parent=1 // pred_check
      _
    $region19: #{rubiks_cube_ppo_forward.1} parent=1 // pred_check_branch
      %46 = sbr.rel (0) target = $region21
    $region20: #{rubiks_cube_ppo_forward.1} parent=1 // pred_region
      _
    $region21: #{rubiks_cube_ppo_forward.1} parent=1 // pred_fallthru
      _
    // Predicated region
    $region22: #{rubiks_cube_ppo_forward.1} parent=1 // pred_check
      _
    $region23: #{rubiks_cube_ppo_forward.1} parent=1 // pred_check_branch
      %48 = sbr.rel (0) target = $region25
    $region24: #{rubiks_cube_ppo_forward.1} parent=1 // pred_region
      %50 = vsyncadd [#allocation5], 0
      %s51 = sshll.u32 %s5, 4
      %s52 = int_to_ptr.hbm [resolvable:$true] %s51
      %s53 = sshll.u32 [#allocation6], 4
      %s54 = int_to_ptr.vmem [resolvable:$true] %s53
      %59 = dma.hbm_to_vmem [thread:$0]  %s52, 2048, %s54, [#allocation5], 64, 64, 4
    $region25: #{rubiks_cube_ppo_forward.1} parent=1 // pred_fallthru
      _
    // Predicated region
    $region26: #{rubiks_cube_ppo_forward.1} parent=1 // pred_check
      _
    $region27: #{rubiks_cube_ppo_forward.1} parent=1 // pred_check_branch
      %61 = sbr.rel (0) target = $region29
    $region28: #{rubiks_cube_ppo_forward.1} parent=1 // pred_region
      _
    $region29: #{rubiks_cube_ppo_forward.1} parent=1 // pred_fallthru
      _
    // Predicated region
    $region30: #{rubiks_cube_ppo_forward.1} parent=1 // pred_check
      _
    $region31: #{rubiks_cube_ppo_forward.1} parent=1 // pred_check_branch
      %63 = sbr.rel (0) target = $region33
    $region32: #{rubiks_cube_ppo_forward.1} parent=1 // pred_region
      _
    $region33: #{rubiks_cube_ppo_forward.1} parent=1 // pred_fallthru
      _
    // Predicated region
    $region34: #{rubiks_cube_ppo_forward.1} parent=1 // pred_check
      _
    $region35: #{rubiks_cube_ppo_forward.1} parent=1 // pred_check_branch
      %65 = sbr.rel (0) target = $region37
    $region36: #{rubiks_cube_ppo_forward.1} parent=1 // pred_region
      %67 = dma.done [#allocation3], 1792
    $region37: #{rubiks_cube_ppo_forward.1} parent=1 // pred_fallthru
      _
    // Predicated region
    $region38: #{rubiks_cube_ppo_forward.1} parent=1 // pred_check
      _
    $region39: #{rubiks_cube_ppo_forward.1} parent=1 // pred_check_branch
      %69 = sbr.rel (0) target = $region41
    $region40: #{rubiks_cube_ppo_forward.1} parent=1 // pred_region
      %71 = dma.done [#allocation5], 8192
    $region41: #{rubiks_cube_ppo_forward.1} parent=1 // pred_fallthru
      _
    // Predicated region
    $region42: #{rubiks_cube_ppo_forward.1} parent=1 // pred_check
      _
    $region43: #{rubiks_cube_ppo_forward.1} parent=1 // pred_check_branch
      %73 = sbr.rel (0) target = $region45
    $region44: #{rubiks_cube_ppo_forward.1} parent=1 // pred_region
      %75 = dma.done [#allocation5], 2048
    $region45: #{rubiks_cube_ppo_forward.1} parent=1 // pred_fallthru
      _
    %v77 = vld [vmem:[%s0] sm:$0xf]
    %v78 = vpack.c.bf16 %v77, %v77
    %v79 = vld [vmem:[#allocation2] sm:$0xff]
    %v80 = vld [vmem:[#allocation2 + $0x8] sm:$0xff]
    %v81 = vld [vmem:[#allocation2 + $0x10] sm:$0xff]
    %v82 = vld [vmem:[#allocation2 + $0x18] sm:$0xff]
    %v83 = vld [vmem:[#allocation2 + $0x20] sm:$0xff]
    %v84 = vld [vmem:[#allocation2 + $0x28] sm:$0xff]
    %v85 = vld [vmem:[#allocation2 + $0x30] sm:$0xff]
    %v86 = vld [vmem:[#allocation2 + $0x38] sm:$0xff]
    %v87 = vld [vmem:[#allocation2 + $0x40] sm:$0xff]
    %v88 = vld [vmem:[#allocation2 + $0x48] sm:$0xff]
    %v89 = vld [vmem:[#allocation2 + $0x50] sm:$0xff]
    %v90 = vld [vmem:[#allocation2 + $0x58] sm:$0xff]
    %v91 = vld [vmem:[#allocation2 + $0x60] sm:$0x77]
    %v92 = vld [vmem:[#allocation2 + $0x68] sm:$0x77]
    %v93 = vld [vmem:[%s2] sm:$0xf]
    %v95 = vperm.slane %v93, 0
    %v96 = vperm.slane %v93, 1
    %v97 = vperm.slane %v93, 2
    %v98 = vperm.slane %v93, 3
    %v117 = vunpack.c.l.b16 %v79
    %v118 = vunpack.c.h.b16 %v79
    %v119 = vunpack.c.l.b16 %v80
    %v120 = vunpack.c.h.b16 %v80
    %v121 = vunpack.c.l.b16 %v81
    %v122 = vunpack.c.h.b16 %v81
    %v123 = vunpack.c.l.b16 %v82
    %v124 = vunpack.c.h.b16 %v82
    %v125 = vunpack.c.l.b16 %v83
    %v126 = vunpack.c.h.b16 %v83
    %v127 = vunpack.c.l.b16 %v84
    %v128 = vunpack.c.h.b16 %v84
    %v129 = vunpack.c.l.b16 %v85
    %v130 = vunpack.c.h.b16 %v85
    %v131 = vunpack.c.l.b16 %v86
    %v132 = vunpack.c.h.b16 %v86
    %v133 = vunpack.c.l.b16 %v87
    %v134 = vunpack.c.h.b16 %v87
    %v135 = vunpack.c.l.b16 %v88
    %v136 = vunpack.c.h.b16 %v88
    %v137 = vunpack.c.l.b16 %v89
    %v138 = vunpack.c.h.b16 %v89
    %v139 = vunpack.c.l.b16 %v90
    %v140 = vunpack.c.h.b16 %v90
    %v141 = vunpack.c.l.b16 %v91
    %v142 = vunpack.c.h.b16 %v91
    %v143 = vunpack.c.l.b16 %v92
    %v144 = vunpack.c.h.b16 %v92
    %v145 = vpack.c.b16 %v121, %v117
    %v146 = vpack.c.b16 %v122, %v118
    %v147 = vpack.c.b16 %v123, %v119
    %v148 = vpack.c.b16 %v124, %v120
    %v149 = vpack.c.b16 %v129, %v125
    %v150 = vpack.c.b16 %v130, %v126
    %v151 = vpack.c.b16 %v131, %v127
    %v152 = vpack.c.b16 %v132, %v128
    %v153 = vpack.c.b16 %v137, %v133
    %v154 = vpack.c.b16 %v138, %v134
    %v155 = vpack.c.b16 %v139, %v135
    %v156 = vpack.c.b16 %v140, %v136
    %v157 = vpack.c.b16 %v141, %v141
    %v158 = vpack.c.b16 %v142, %v142
    %v159 = vpack.c.b16 %v143, %v143
    %v160 = vpack.c.b16 %v144, %v144
    %vm173 = vcmask 441344
    %v175 = vsel %vm173, %v78, 0
    %vm177 = vcmask 1042432
    %v179 = vsel %vm177, %v157, 0
    %v182 = vsel %vm177, %v158, 0
    %v185 = vsel %vm177, %v159, 0
    %v188 = vsel %vm177, %v160, 0
    %190 = vmatpush.bf16.msra.mxu0 0
    %191 = vmatpush.bf16.msra.mxu0 0
    %192 = vmatpush.bf16.msra.mxu0 0
    %193 = vmatpush.bf16.msra.mxu0 0
    %194 = vmatpush.bf16.msra.mxu0 %v179
    %195 = vmatpush.bf16.msra.mxu0 %v153
    %196 = vmatpush.bf16.msra.mxu0 %v149
    %197 = vmatpush.bf16.msra.mxu0 %v145
    %198 = vmatmul.bf16.gmra.mxu0 %v175
    %v199 = vpop.f32.mrf.mxu0
    %v200 = vadd.f32 %v95, %v199
    %v201 = vpop.f32.mrf.mxu0
    %202 = vdwg.mxu0
    %203 = vmatpush.bf16.msra.mxu0 0
    %204 = vmatpush.bf16.msra.mxu0 0
    %205 = vmatpush.bf16.msra.mxu0 0
    %206 = vmatpush.bf16.msra.mxu0 0
    %207 = vmatpush.bf16.msra.mxu0 %v182
    %208 = vmatpush.bf16.msra.mxu0 %v154
    %209 = vmatpush.bf16.msra.mxu0 %v150
    %210 = vmatpush.bf16.msra.mxu0 %v146
    %211 = vmatmul.bf16.gmra.mxu0 %v175
    %v212 = vpop.f32.mrf.mxu0
    %v213 = vadd.f32 %v96, %v212
    %v214 = vpop.f32.mrf.mxu0
    %215 = vdwg.mxu0
    %216 = vmatpush.bf16.msra.mxu0 0
    %217 = vmatpush.bf16.msra.mxu0 0
    %218 = vmatpush.bf16.msra.mxu0 0
    %219 = vmatpush.bf16.msra.mxu0 0
    %220 = vmatpush.bf16.msra.mxu0 %v185
    %221 = vmatpush.bf16.msra.mxu0 %v155
    %222 = vmatpush.bf16.msra.mxu0 %v151
    %223 = vmatpush.bf16.msra.mxu0 %v147
    %224 = vmatmul.bf16.gmra.mxu0 %v175
    %v225 = vpop.f32.mrf.mxu0
    %v226 = vadd.f32 %v97, %v225
    %v227 = vpop.f32.mrf.mxu0
    %228 = vdwg.mxu0
    %229 = vmatpush.bf16.msra.mxu0 0
    %230 = vmatpush.bf16.msra.mxu0 0
    %231 = vmatpush.bf16.msra.mxu0 0
    %232 = vmatpush.bf16.msra.mxu0 0
    %233 = vmatpush.bf16.msra.mxu0 %v188
    %234 = vmatpush.bf16.msra.mxu0 %v156
    %235 = vmatpush.bf16.msra.mxu0 %v152
    %236 = vmatpush.bf16.msra.mxu0 %v148
    %237 = vmatmul.bf16.gmra.mxu0 %v175
    %v238 = vpop.f32.mrf.mxu0
    %v239 = vadd.f32 %v98, %v238
    %v240 = vpop.f32.mrf.mxu0
    %241 = vdwg.mxu0
    %v242 = vmax.f32 %v200, 0.0
    %v243 = vmax.f32 %v213, 0.0
    %v244 = vmax.f32 %v226, 0.0
    %v245 = vmax.f32 %v239, 0.0
    %v246 = vpack.c.bf16 %v243, %v242
    %v247 = vpack.c.bf16 %v245, %v244
    %v248 = vld [vmem:[#allocation4] sm:$0xff]
    %v249 = vld [vmem:[#allocation4 + $0x8] sm:$0xff]
    %v250 = vld [vmem:[#allocation4 + $0x10] sm:$0xff]
    %v251 = vld [vmem:[#allocation4 + $0x18] sm:$0xff]
    %v252 = vld [vmem:[#allocation4 + $0x20] sm:$0xff]
    %v253 = vld [vmem:[#allocation4 + $0x28] sm:$0xff]
    %v254 = vld [vmem:[#allocation4 + $0x30] sm:$0xff]
    %v255 = vld [vmem:[#allocation4 + $0x38] sm:$0xff]
    %v256 = vld [vmem:[#allocation4 + $0x40] sm:$0xff]
    %v257 = vld [vmem:[#allocation4 + $0x48] sm:$0xff]
    %v258 = vld [vmem:[#allocation4 + $0x50] sm:$0xff]
    %v259 = vld [vmem:[#allocation4 + $0x58] sm:$0xff]
    %v260 = vld [vmem:[#allocation4 + $0x60] sm:$0xff]
    %v261 = vld [vmem:[#allocation4 + $0x68] sm:$0xff]
    %v262 = vld [vmem:[#allocation4 + $0x70] sm:$0xff]
    %v263 = vld [vmem:[#allocation4 + $0x78] sm:$0xff]
    %v264 = vld [vmem:[#allocation4 + $0x80] sm:$0xff]
    %v265 = vld [vmem:[#allocation4 + $0x88] sm:$0xff]
    %v266 = vld [vmem:[#allocation4 + $0x90] sm:$0xff]
    %v267 = vld [vmem:[#allocation4 + $0x98] sm:$0xff]
    %v268 = vld [vmem:[#allocation4 + $0xa0] sm:$0xff]
    %v269 = vld [vmem:[#allocation4 + $0xa8] sm:$0xff]
    %v270 = vld [vmem:[#allocation4 + $0xb0] sm:$0xff]
    %v271 = vld [vmem:[#allocation4 + $0xb8] sm:$0xff]
    %v272 = vld [vmem:[#allocation4 + $0xc0] sm:$0xff]
    %v273 = vld [vmem:[#allocation4 + $0xc8] sm:$0xff]
    %v274 = vld [vmem:[#allocation4 + $0xd0] sm:$0xff]
    %v275 = vld [vmem:[#allocation4 + $0xd8] sm:$0xff]
    %v276 = vld [vmem:[#allocation4 + $0xe0] sm:$0xff]
    %v277 = vld [vmem:[#allocation4 + $0xe8] sm:$0xff]
    %v278 = vld [vmem:[#allocation4 + $0xf0] sm:$0xff]
    %v279 = vld [vmem:[#allocation4 + $0xf8] sm:$0xff]
    %v280 = vld [vmem:[%s4] sm:$0x3]
    %v282 = vperm.slane %v280, 0
    %v283 = vperm.slane %v280, 1
    %v287 = vunpack.c.l.b16 %v246
    %v288 = vunpack.c.h.b16 %v246
    %v289 = vpack.c.b16 %v287, %v287
    %v290 = vpack.c.b16 %v288, %v288
    %v325 = vunpack.c.l.b16 %v248
    %v326 = vunpack.c.h.b16 %v248
    %v327 = vunpack.c.l.b16 %v249
    %v328 = vunpack.c.h.b16 %v249
    %v329 = vunpack.c.l.b16 %v250
    %v330 = vunpack.c.h.b16 %v250
    %v331 = vunpack.c.l.b16 %v251
    %v332 = vunpack.c.h.b16 %v251
    %v333 = vunpack.c.l.b16 %v252
    %v334 = vunpack.c.h.b16 %v252
    %v335 = vunpack.c.l.b16 %v253
    %v336 = vunpack.c.h.b16 %v253
    %v337 = vunpack.c.l.b16 %v254
    %v338 = vunpack.c.h.b16 %v254
    %v339 = vunpack.c.l.b16 %v255
    %v340 = vunpack.c.h.b16 %v255
    %v341 = vunpack.c.l.b16 %v256
    %v342 = vunpack.c.h.b16 %v256
    %v343 = vunpack.c.l.b16 %v257
    %v344 = vunpack.c.h.b16 %v257
    %v345 = vunpack.c.l.b16 %v258
    %v346 = vunpack.c.h.b16 %v258
    %v347 = vunpack.c.l.b16 %v259
    %v348 = vunpack.c.h.b16 %v259
    %v349 = vunpack.c.l.b16 %v260
    %v350 = vunpack.c.h.b16 %v260
    %v351 = vunpack.c.l.b16 %v261
    %v352 = vunpack.c.h.b16 %v261
    %v353 = vunpack.c.l.b16 %v262
    %v354 = vunpack.c.h.b16 %v262
    %v355 = vunpack.c.l.b16 %v263
    %v356 = vunpack.c.h.b16 %v263
    %v357 = vunpack.c.l.b16 %v264
    %v358 = vunpack.c.h.b16 %v264
    %v359 = vunpack.c.l.b16 %v265
    %v360 = vunpack.c.h.b16 %v265
    %v361 = vunpack.c.l.b16 %v266
    %v362 = vunpack.c.h.b16 %v266
    %v363 = vunpack.c.l.b16 %v267
    %v364 = vunpack.c.h.b16 %v267
    %v365 = vunpack.c.l.b16 %v268
    %v366 = vunpack.c.h.b16 %v268
    %v367 = vunpack.c.l.b16 %v269
    %v368 = vunpack.c.h.b16 %v269
    %v369 = vunpack.c.l.b16 %v270
    %v370 = vunpack.c.h.b16 %v270
    %v371 = vunpack.c.l.b16 %v271
    %v372 = vunpack.c.h.b16 %v271
    %v373 = vunpack.c.l.b16 %v272
    %v374 = vunpack.c.h.b16 %v272
    %v375 = vunpack.c.l.b16 %v273
    %v376 = vunpack.c.h.b16 %v273
    %v377 = vunpack.c.l.b16 %v274
    %v378 = vunpack.c.h.b16 %v274
    %v379 = vunpack.c.l.b16 %v275
    %v380 = vunpack.c.h.b16 %v275
    %v381 = vunpack.c.l.b16 %v276
    %v382 = vunpack.c.h.b16 %v276
    %v383 = vunpack.c.l.b16 %v277
    %v384 = vunpack.c.h.b16 %v277
    %v385 = vunpack.c.l.b16 %v278
    %v386 = vunpack.c.h.b16 %v278
    %v387 = vunpack.c.l.b16 %v279
    %v388 = vunpack.c.h.b16 %v279
    %v389 = vpack.c.b16 %v327, %v325
    %v390 = vpack.c.b16 %v328, %v326
    %v391 = vpack.c.b16 %v331, %v329
    %v392 = vpack.c.b16 %v332, %v330
    %v393 = vpack.c.b16 %v335, %v333
    %v394 = vpack.c.b16 %v336, %v334
    %v395 = vpack.c.b16 %v339, %v337
    %v396 = vpack.c.b16 %v340, %v338
    %v397 = vpack.c.b16 %v343, %v341
    %v398 = vpack.c.b16 %v344, %v342
    %v399 = vpack.c.b16 %v347, %v345
    %v400 = vpack.c.b16 %v348, %v346
    %v401 = vpack.c.b16 %v351, %v349
    %v402 = vpack.c.b16 %v352, %v350
    %v403 = vpack.c.b16 %v355, %v353
    %v404 = vpack.c.b16 %v356, %v354
    %v405 = vpack.c.b16 %v359, %v357
    %v406 = vpack.c.b16 %v360, %v358
    %v407 = vpack.c.b16 %v363, %v361
    %v408 = vpack.c.b16 %v364, %v362
    %v409 = vpack.c.b16 %v367, %v365
    %v410 = vpack.c.b16 %v368, %v366
    %v411 = vpack.c.b16 %v371, %v369
    %v412 = vpack.c.b16 %v372, %v370
    %v413 = vpack.c.b16 %v375, %v373
    %v414 = vpack.c.b16 %v376, %v374
    %v415 = vpack.c.b16 %v379, %v377
    %v416 = vpack.c.b16 %v380, %v378
    %v417 = vpack.c.b16 %v383, %v381
    %v418 = vpack.c.b16 %v384, %v382
    %v419 = vpack.c.b16 %v387, %v385
    %v420 = vpack.c.b16 %v388, %v386
    %453 = vmatpush.bf16.msra.mxu0 %v403
    %454 = vmatpush.bf16.msra.mxu0 %v401
    %455 = vmatpush.bf16.msra.mxu0 %v399
    %456 = vmatpush.bf16.msra.mxu0 %v397
    %457 = vmatpush.bf16.msra.mxu0 %v395
    %458 = vmatpush.bf16.msra.mxu0 %v393
    %459 = vmatpush.bf16.msra.mxu0 %v391
    %460 = vmatpush.bf16.msra.mxu0 %v389
    %461 = vmatmul.bf16.gmra.mxu0 %v289
    %v462 = vpop.f32.mrf.mxu0
    %v463 = vadd.f32 %v282, %v462
    %v464 = vpop.f32.mrf.mxu0
    %465 = vdwg.mxu0
    %466 = vmatpush.bf16.msra.mxu0 %v419
    %467 = vmatpush.bf16.msra.mxu0 %v417
    %468 = vmatpush.bf16.msra.mxu0 %v415
    %469 = vmatpush.bf16.msra.mxu0 %v413
    %470 = vmatpush.bf16.msra.mxu0 %v411
    %471 = vmatpush.bf16.msra.mxu0 %v409
    %472 = vmatpush.bf16.msra.mxu0 %v407
    %473 = vmatpush.bf16.msra.mxu0 %v405
    %474 = vmatmul.bf16.gmra.mxu0 %v290
    %v475 = vpop.f32.mrf.mxu0
    %v476 = vadd.f32 %v463, %v475
    %v477 = vpop.f32.mrf.mxu0
    %478 = vdwg.mxu0
    %479 = vmatpush.bf16.msra.mxu0 %v404
    %480 = vmatpush.bf16.msra.mxu0 %v402
    %481 = vmatpush.bf16.msra.mxu0 %v400
    %482 = vmatpush.bf16.msra.mxu0 %v398
    %483 = vmatpush.bf16.msra.mxu0 %v396
    %484 = vmatpush.bf16.msra.mxu0 %v394
    %485 = vmatpush.bf16.msra.mxu0 %v392
    %486 = vmatpush.bf16.msra.mxu0 %v390
    %487 = vmatmul.bf16.gmra.mxu0 %v289
    %v488 = vpop.f32.mrf.mxu0
    %v489 = vadd.f32 %v283, %v488
    %v490 = vpop.f32.mrf.mxu0
    %491 = vdwg.mxu0
    %492 = vmatpush.bf16.msra.mxu0 %v420
    %493 = vmatpush.bf16.msra.mxu0 %v418
    %494 = vmatpush.bf16.msra.mxu0 %v416
    %495 = vmatpush.bf16.msra.mxu0 %v414
    %496 = vmatpush.bf16.msra.mxu0 %v412
    %497 = vmatpush.bf16.msra.mxu0 %v410
    %498 = vmatpush.bf16.msra.mxu0 %v408
    %499 = vmatpush.bf16.msra.mxu0 %v406
    %500 = vmatmul.bf16.gmra.mxu0 %v290
    %v501 = vpop.f32.mrf.mxu0
    %v502 = vadd.f32 %v489, %v501
    %v503 = vpop.f32.mrf.mxu0
    %504 = vdwg.mxu0
    %v505 = vmax.f32 %v476, 0.0
    %v506 = vmax.f32 %v502, 0.0
    %v507 = vpack.c.bf16 %v505, %v505
    %v508 = vpack.c.bf16 %v506, %v506
    %s509 = scalar_lea.vmem [#allocation4], 256
    %v510 = vld [vmem:[%s509] sm:$0xff]
    %v511 = vld [vmem:[%s509 + $0x8] sm:$0xff]
    %v512 = vld [vmem:[%s509 + $0x10] sm:$0xff]
    %v513 = vld [vmem:[%s509 + $0x18] sm:$0xff]
    %v514 = vld [vmem:[%s509 + $0x20] sm:$0xff]
    %v515 = vld [vmem:[%s509 + $0x28] sm:$0xff]
    %v516 = vld [vmem:[%s509 + $0x30] sm:$0xff]
    %v517 = vld [vmem:[%s509 + $0x38] sm:$0xff]
    %v518 = vld [vmem:[%s509 + $0x40] sm:$0xff]
    %v519 = vld [vmem:[%s509 + $0x48] sm:$0xff]
    %v520 = vld [vmem:[%s509 + $0x50] sm:$0xff]
    %v521 = vld [vmem:[%s509 + $0x58] sm:$0xff]
    %v522 = vld [vmem:[%s509 + $0x60] sm:$0xff]
    %v523 = vld [vmem:[%s509 + $0x68] sm:$0xff]
    %v524 = vld [vmem:[%s509 + $0x70] sm:$0xff]
    %v525 = vld [vmem:[%s509 + $0x78] sm:$0xff]
    %v526 = vld [vmem:[%s509 + $0x80] sm:$0xff]
    %v527 = vld [vmem:[%s509 + $0x88] sm:$0xff]
    %v528 = vld [vmem:[%s509 + $0x90] sm:$0xff]
    %v529 = vld [vmem:[%s509 + $0x98] sm:$0xff]
    %v530 = vld [vmem:[%s509 + $0xa0] sm:$0xff]
    %v531 = vld [vmem:[%s509 + $0xa8] sm:$0xff]
    %v532 = vld [vmem:[%s509 + $0xb0] sm:$0xff]
    %v533 = vld [vmem:[%s509 + $0xb8] sm:$0xff]
    %v534 = vld [vmem:[%s509 + $0xc0] sm:$0xff]
    %v535 = vld [vmem:[%s509 + $0xc8] sm:$0xff]
    %v536 = vld [vmem:[%s509 + $0xd0] sm:$0xff]
    %v537 = vld [vmem:[%s509 + $0xd8] sm:$0xff]
    %v538 = vld [vmem:[%s509 + $0xe0] sm:$0xff]
    %v539 = vld [vmem:[%s509 + $0xe8] sm:$0xff]
    %v540 = vld [vmem:[%s509 + $0xf0] sm:$0xff]
    %v541 = vld [vmem:[%s509 + $0xf8] sm:$0xff]
    %s542 = scalar_lea.vmem %s4, 2
    %v543 = vld [vmem:[%s542] sm:$0x3]
    %v545 = vperm.slane %v543, 0
    %v546 = vperm.slane %v543, 1
    %v550 = vunpack.c.l.b16 %v247
    %v551 = vunpack.c.h.b16 %v247
    %v552 = vpack.c.b16 %v550, %v550
    %v553 = vpack.c.b16 %v551, %v551
    %v588 = vunpack.c.l.b16 %v510
    %v589 = vunpack.c.h.b16 %v510
    %v590 = vunpack.c.l.b16 %v511
    %v591 = vunpack.c.h.b16 %v511
    %v592 = vunpack.c.l.b16 %v512
    %v593 = vunpack.c.h.b16 %v512
    %v594 = vunpack.c.l.b16 %v513
    %v595 = vunpack.c.h.b16 %v513
    %v596 = vunpack.c.l.b16 %v514
    %v597 = vunpack.c.h.b16 %v514
    %v598 = vunpack.c.l.b16 %v515
    %v599 = vunpack.c.h.b16 %v515
    %v600 = vunpack.c.l.b16 %v516
    %v601 = vunpack.c.h.b16 %v516
    %v602 = vunpack.c.l.b16 %v517
    %v603 = vunpack.c.h.b16 %v517
    %v604 = vunpack.c.l.b16 %v518
    %v605 = vunpack.c.h.b16 %v518
    %v606 = vunpack.c.l.b16 %v519
    %v607 = vunpack.c.h.b16 %v519
    %v608 = vunpack.c.l.b16 %v520
    %v609 = vunpack.c.h.b16 %v520
    %v610 = vunpack.c.l.b16 %v521
    %v611 = vunpack.c.h.b16 %v521
    %v612 = vunpack.c.l.b16 %v522
    %v613 = vunpack.c.h.b16 %v522
    %v614 = vunpack.c.l.b16 %v523
    %v615 = vunpack.c.h.b16 %v523
    %v616 = vunpack.c.l.b16 %v524
    %v617 = vunpack.c.h.b16 %v524
    %v618 = vunpack.c.l.b16 %v525
    %v619 = vunpack.c.h.b16 %v525
    %v620 = vunpack.c.l.b16 %v526
    %v621 = vunpack.c.h.b16 %v526
    %v622 = vunpack.c.l.b16 %v527
    %v623 = vunpack.c.h.b16 %v527
    %v624 = vunpack.c.l.b16 %v528
    %v625 = vunpack.c.h.b16 %v528
    %v626 = vunpack.c.l.b16 %v529
    %v627 = vunpack.c.h.b16 %v529
    %v628 = vunpack.c.l.b16 %v530
    %v629 = vunpack.c.h.b16 %v530
    %v630 = vunpack.c.l.b16 %v531
    %v631 = vunpack.c.h.b16 %v531
    %v632 = vunpack.c.l.b16 %v532
    %v633 = vunpack.c.h.b16 %v532
    %v634 = vunpack.c.l.b16 %v533
    %v635 = vunpack.c.h.b16 %v533
    %v636 = vunpack.c.l.b16 %v534
    %v637 = vunpack.c.h.b16 %v534
    %v638 = vunpack.c.l.b16 %v535
    %v639 = vunpack.c.h.b16 %v535
    %v640 = vunpack.c.l.b16 %v536
    %v641 = vunpack.c.h.b16 %v536
    %v642 = vunpack.c.l.b16 %v537
    %v643 = vunpack.c.h.b16 %v537
    %v644 = vunpack.c.l.b16 %v538
    %v645 = vunpack.c.h.b16 %v538
    %v646 = vunpack.c.l.b16 %v539
    %v647 = vunpack.c.h.b16 %v539
    %v648 = vunpack.c.l.b16 %v540
    %v649 = vunpack.c.h.b16 %v540
    %v650 = vunpack.c.l.b16 %v541
    %v651 = vunpack.c.h.b16 %v541
    %v652 = vpack.c.b16 %v590, %v588
    %v653 = vpack.c.b16 %v591, %v589
    %v654 = vpack.c.b16 %v594, %v592
    %v655 = vpack.c.b16 %v595, %v593
    %v656 = vpack.c.b16 %v598, %v596
    %v657 = vpack.c.b16 %v599, %v597
    %v658 = vpack.c.b16 %v602, %v600
    %v659 = vpack.c.b16 %v603, %v601
    %v660 = vpack.c.b16 %v606, %v604
    %v661 = vpack.c.b16 %v607, %v605
    %v662 = vpack.c.b16 %v610, %v608
    %v663 = vpack.c.b16 %v611, %v609
    %v664 = vpack.c.b16 %v614, %v612
    %v665 = vpack.c.b16 %v615, %v613
    %v666 = vpack.c.b16 %v618, %v616
    %v667 = vpack.c.b16 %v619, %v617
    %v668 = vpack.c.b16 %v622, %v620
    %v669 = vpack.c.b16 %v623, %v621
    %v670 = vpack.c.b16 %v626, %v624
    %v671 = vpack.c.b16 %v627, %v625
    %v672 = vpack.c.b16 %v630, %v628
    %v673 = vpack.c.b16 %v631, %v629
    %v674 = vpack.c.b16 %v634, %v632
    %v675 = vpack.c.b16 %v635, %v633
    %v676 = vpack.c.b16 %v638, %v636
    %v677 = vpack.c.b16 %v639, %v637
    %v678 = vpack.c.b16 %v642, %v640
    %v679 = vpack.c.b16 %v643, %v641
    %v680 = vpack.c.b16 %v646, %v644
    %v681 = vpack.c.b16 %v647, %v645
    %v682 = vpack.c.b16 %v650, %v648
    %v683 = vpack.c.b16 %v651, %v649
    %716 = vmatpush.bf16.msra.mxu0 %v666
    %717 = vmatpush.bf16.msra.mxu0 %v664
    %718 = vmatpush.bf16.msra.mxu0 %v662
    %719 = vmatpush.bf16.msra.mxu0 %v660
    %720 = vmatpush.bf16.msra.mxu0 %v658
    %721 = vmatpush.bf16.msra.mxu0 %v656
    %722 = vmatpush.bf16.msra.mxu0 %v654
    %723 = vmatpush.bf16.msra.mxu0 %v652
    %724 = vmatmul.bf16.gmra.mxu0 %v552
    %v725 = vpop.f32.mrf.mxu0
    %v726 = vadd.f32 %v545, %v725
    %v727 = vpop.f32.mrf.mxu0
    %728 = vdwg.mxu0
    %729 = vmatpush.bf16.msra.mxu0 %v682
    %730 = vmatpush.bf16.msra.mxu0 %v680
    %731 = vmatpush.bf16.msra.mxu0 %v678
    %732 = vmatpush.bf16.msra.mxu0 %v676
    %733 = vmatpush.bf16.msra.mxu0 %v674
    %734 = vmatpush.bf16.msra.mxu0 %v672
    %735 = vmatpush.bf16.msra.mxu0 %v670
    %736 = vmatpush.bf16.msra.mxu0 %v668
    %737 = vmatmul.bf16.gmra.mxu0 %v553
    %v738 = vpop.f32.mrf.mxu0
    %v739 = vadd.f32 %v726, %v738
    %v740 = vpop.f32.mrf.mxu0
    %741 = vdwg.mxu0
    %742 = vmatpush.bf16.msra.mxu0 %v667
    %743 = vmatpush.bf16.msra.mxu0 %v665
    %744 = vmatpush.bf16.msra.mxu0 %v663
    %745 = vmatpush.bf16.msra.mxu0 %v661
    %746 = vmatpush.bf16.msra.mxu0 %v659
    %747 = vmatpush.bf16.msra.mxu0 %v657
    %748 = vmatpush.bf16.msra.mxu0 %v655
    %749 = vmatpush.bf16.msra.mxu0 %v653
    %750 = vmatmul.bf16.gmra.mxu0 %v552
    %v751 = vpop.f32.mrf.mxu0
    %v752 = vadd.f32 %v546, %v751
    %v753 = vpop.f32.mrf.mxu0
    %754 = vdwg.mxu0
    %755 = vmatpush.bf16.msra.mxu0 %v683
    %756 = vmatpush.bf16.msra.mxu0 %v681
    %757 = vmatpush.bf16.msra.mxu0 %v679
    %758 = vmatpush.bf16.msra.mxu0 %v677
    %759 = vmatpush.bf16.msra.mxu0 %v675
    %760 = vmatpush.bf16.msra.mxu0 %v673
    %761 = vmatpush.bf16.msra.mxu0 %v671
    %762 = vmatpush.bf16.msra.mxu0 %v669
    %763 = vmatmul.bf16.gmra.mxu0 %v553
    %v764 = vpop.f32.mrf.mxu0
    %v765 = vadd.f32 %v752, %v764
    %v766 = vpop.f32.mrf.mxu0
    %767 = vdwg.mxu0
    %v768 = vmax.f32 %v739, 0.0
    %v769 = vmax.f32 %v765, 0.0
    %v770 = vld [vmem:[#allocation6] sm:$0xf]
    %v771 = vld [vmem:[#allocation6 + $0x4] sm:$0xf]
    %v772 = vld [vmem:[#allocation6 + $0x8] sm:$0xf]
    %v773 = vld [vmem:[#allocation6 + $0xc] sm:$0xf]
    %v774 = vld [vmem:[#allocation6 + $0x10] sm:$0xf]
    %v775 = vld [vmem:[#allocation6 + $0x14] sm:$0xf]
    %v776 = vld [vmem:[#allocation6 + $0x18] sm:$0xf]
    %v777 = vld [vmem:[#allocation6 + $0x1c] sm:$0xf]
    %v778 = vld [vmem:[#allocation6 + $0x20] sm:$0xf]
    %v779 = vld [vmem:[#allocation6 + $0x24] sm:$0xf]
    %v780 = vld [vmem:[#allocation6 + $0x28] sm:$0xf]
    %v781 = vld [vmem:[#allocation6 + $0x2c] sm:$0xf]
    %v782 = vld [vmem:[#allocation6 + $0x30] sm:$0xf]
    %v783 = vld [vmem:[#allocation6 + $0x34] sm:$0xf]
    %v784 = vld [vmem:[#allocation6 + $0x38] sm:$0xf]
    %v785 = vld [vmem:[#allocation6 + $0x3c] sm:$0xf]
    %v786 = vld [vmem:[#allocation6 + $0x40] sm:$0xf]
    %v787 = vld [vmem:[#allocation6 + $0x44] sm:$0xf]
    %v788 = vld [vmem:[#allocation6 + $0x48] sm:$0xf]
    %v789 = vld [vmem:[#allocation6 + $0x4c] sm:$0xf]
    %v790 = vld [vmem:[#allocation6 + $0x50] sm:$0xf]
    %v791 = vld [vmem:[#allocation6 + $0x54] sm:$0xf]
    %v792 = vld [vmem:[#allocation6 + $0x58] sm:$0xf]
    %v793 = vld [vmem:[#allocation6 + $0x5c] sm:$0xf]
    %v794 = vld [vmem:[#allocation6 + $0x60] sm:$0xf]
    %v795 = vld [vmem:[#allocation6 + $0x64] sm:$0xf]
    %v796 = vld [vmem:[#allocation6 + $0x68] sm:$0xf]
    %v797 = vld [vmem:[#allocation6 + $0x6c] sm:$0xf]
    %v798 = vld [vmem:[#allocation6 + $0x70] sm:$0xf]
    %v799 = vld [vmem:[#allocation6 + $0x74] sm:$0xf]
    %v800 = vld [vmem:[#allocation6 + $0x78] sm:$0xf]
    %v801 = vld [vmem:[#allocation6 + $0x7c] sm:$0xf]
    %v802 = vld [vmem:[%s6] sm:$0x1]
    %v804 = vperm.slane %v802, 0
    %v838 = vunpack.c.l.b16 %v770
    %v839 = vunpack.c.l.b16 %v771
    %v840 = vunpack.c.l.b16 %v772
    %v841 = vunpack.c.l.b16 %v773
    %v842 = vunpack.c.l.b16 %v774
    %v843 = vunpack.c.l.b16 %v775
    %v844 = vunpack.c.l.b16 %v776
    %v845 = vunpack.c.l.b16 %v777
    %v846 = vunpack.c.l.b16 %v778
    %v847 = vunpack.c.l.b16 %v779
    %v848 = vunpack.c.l.b16 %v780
    %v849 = vunpack.c.l.b16 %v781
    %v850 = vunpack.c.l.b16 %v782
    %v851 = vunpack.c.l.b16 %v783
    %v852 = vunpack.c.l.b16 %v784
    %v853 = vunpack.c.l.b16 %v785
    %v854 = vunpack.c.l.b16 %v786
    %v855 = vunpack.c.l.b16 %v787
    %v856 = vunpack.c.l.b16 %v788
    %v857 = vunpack.c.l.b16 %v789
    %v858 = vunpack.c.l.b16 %v790
    %v859 = vunpack.c.l.b16 %v791
    %v860 = vunpack.c.l.b16 %v792
    %v861 = vunpack.c.l.b16 %v793
    %v862 = vunpack.c.l.b16 %v794
    %v863 = vunpack.c.l.b16 %v795
    %v864 = vunpack.c.l.b16 %v796
    %v865 = vunpack.c.l.b16 %v797
    %v866 = vunpack.c.l.b16 %v798
    %v867 = vunpack.c.l.b16 %v799
    %v868 = vunpack.c.l.b16 %v800
    %v869 = vunpack.c.l.b16 %v801
    %v870 = vpack.c.b16 %v839, %v838
    %v871 = vpack.c.b16 %v841, %v840
    %v872 = vpack.c.b16 %v843, %v842
    %v873 = vpack.c.b16 %v845, %v844
    %v874 = vpack.c.b16 %v847, %v846
    %v875 = vpack.c.b16 %v849, %v848
    %v876 = vpack.c.b16 %v851, %v850
    %v877 = vpack.c.b16 %v853, %v852
    %v878 = vpack.c.b16 %v855, %v854
    %v879 = vpack.c.b16 %v857, %v856
    %v880 = vpack.c.b16 %v859, %v858
    %v881 = vpack.c.b16 %v861, %v860
    %v882 = vpack.c.b16 %v863, %v862
    %v883 = vpack.c.b16 %v865, %v864
    %v884 = vpack.c.b16 %v867, %v866
    %v885 = vpack.c.b16 %v869, %v868
    %902 = vmatpush.bf16.msra.mxu0 %v877
    %903 = vmatpush.bf16.msra.mxu0 %v876
    %904 = vmatpush.bf16.msra.mxu0 %v875
    %905 = vmatpush.bf16.msra.mxu0 %v874
    %906 = vmatpush.bf16.msra.mxu0 %v873
    %907 = vmatpush.bf16.msra.mxu0 %v872
    %908 = vmatpush.bf16.msra.mxu0 %v871
    %909 = vmatpush.bf16.msra.mxu0 %v870
    %910 = vmatmul.bf16.gmra.mxu0 %v507
    %v911 = vpop.f32.mrf.mxu0
    %v912 = vadd.f32 %v804, %v911
    %v913 = vpop.f32.mrf.mxu0
    %914 = vdwg.mxu0
    %915 = vmatpush.bf16.msra.mxu0 %v885
    %916 = vmatpush.bf16.msra.mxu0 %v884
    %917 = vmatpush.bf16.msra.mxu0 %v883
    %918 = vmatpush.bf16.msra.mxu0 %v882
    %919 = vmatpush.bf16.msra.mxu0 %v881
    %920 = vmatpush.bf16.msra.mxu0 %v880
    %921 = vmatpush.bf16.msra.mxu0 %v879
    %922 = vmatpush.bf16.msra.mxu0 %v878
    %923 = vmatmul.bf16.gmra.mxu0 %v508
    %v924 = vpop.f32.mrf.mxu0
    %v925 = vadd.f32 %v912, %v924
    %v926 = vpop.f32.mrf.mxu0
    %927 = vdwg.mxu0
    %v928 = vlaneseq
    %v929 = vand.u32 %v928, 127
    %vm930 = vcmp.lt.s32.totalorder %v929, 12
    %v931 = vsel %vm930, %v925, -1e+30
    %vm932 = vcmask 1043456
    %v933 = vsel %vm932, %v931, -inf
    %934 = vmax.xlane.f32.xlu0 %v933
    %v935 = vpop.xlane.xlu0 %934
    %v936 = vsub.f32 %v931, %v935
    %v937 = vmul.f32 %v936, 1.442695
    %v938 = vpow.pop %v937
    %v939 = vsel %vm932, %v938, 0.0
    %940 = vadd.xlane.f32.xlu0 %v939
    %v941 = vpop.xlane.xlu0 %940
    %v942 = vrcp.pop %v941
    %v943 = vmul.f32 %v941, %v942
    %v944 = vsub.f32 1.0, %v943
    %v945 = vmul.f32 %v942, %v944
    %v946 = vadd.f32 %v942, %v945
    %vm947 = vweird.f32 %v941
    %vm948 = vweird.f32 %v942
    %vm949 = vmor %vm947, %vm948
    %v950 = vsel %vm949, %v942, %v946
    %v951 = vand.u32 2147483647, %v941
    %vm952 = vcmp.eq.f32.partialorder %v951, 8.507059e+37
    %v953 = vand.u32 %v941, 2147483648
    %v954 = vor.u32 1.1754944e-38, %v953
    %v955 = vsel %vm952, %v954, %v950
    %v956 = vmul.f32 %v938, %v955
    %v957 = vld [vmem:[%s7] sm:$0x3]
    %v959 = vperm.slane %v957, 0
    %v960 = vperm.slane %v957, 1
    %v963 = vmul.f32 %v768, %v959
    %v964 = vmul.f32 %v769, %v960
    %v965 = vsel %vm932, %v963, 0.0
    %v966 = vsel %vm932, %v964, 0.0
    %v967 = vadd.f32 %v965, %v966
    %968 = vadd.xlane.f32.xlu0 %v967
    %v969 = vpop.xlane.xlu0 %968
    %vm970 = vcmp.eq.s32.totalorder %v929, 12
    %v971 = vadd.f32 %v969, %v804
    %v972 = vsel %vm970, %v971, %v956
    %973 = vst [vmem:[%s8] sm:$0xf] %v972
    // Predicated region
    $region46: #{rubiks_cube_ppo_forward.1} parent=1 // pred_check
      _
    $region47: #{rubiks_cube_ppo_forward.1} parent=1 // pred_check_branch
      %975 = sbr.rel (0) target = $region49
    $region48: #{rubiks_cube_ppo_forward.1} parent=1 // pred_region
      _
    $region49: #{rubiks_cube_ppo_forward.1} parent=1 // pred_fallthru
      _
    // Predicated region
    $region50: #{rubiks_cube_ppo_forward.1} parent=1 // pred_check
      _
    $region51: #{rubiks_cube_ppo_forward.1} parent=1 // pred_check_branch
      %977 = sbr.rel (0) target = $region53
    $region52: #{rubiks_cube_ppo_forward.1} parent=1 // pred_region
      _
    $region53: #{rubiks_cube_ppo_forward.1} parent=1 // pred_fallthru
      _
    %978 = vsyncpa [#allocation3], 1
    %979 = vsyncpa [#allocation5], 1

</llo_original>
